<compile_context>
chip_gen: v6e
topology: v6e:2x2x1
jax: 0.10.0
libtpu: 0.0.40
codegen_flags: <defaults>
</compile_context>

<pallas_src>
import jax
import jax.numpy as jnp
from jax.experimental import pallas as pl
from jax.experimental.pallas import tpu as pltpu


def _round_up(n, m):
    return ((n + m - 1) // m) * m


def _mlp_kernel(x_ref, w1_ref, b1_ref, w2_ref, b2_ref, w3_ref, b3_ref, o_ref):
    # x_ref: [17, TM] bf16 (batch on lanes). Weights are PyTorch-layout [out, in].
    x = x_ref[...]                                                      # [17, TM]
    h1 = jnp.dot(w1_ref[...], x, preferred_element_type=jnp.float32)   # [64, TM] f32
    h1 = jnp.maximum(h1 + b1_ref[...], 0.0)                            # ReLU (f32)
    h2 = jnp.dot(w2_ref[...], h1.astype(jnp.bfloat16),
                 preferred_element_type=jnp.float32)                   # [32, TM] f32
    h2 = jnp.maximum(h2 + b2_ref[...], 0.0)                            # ReLU (f32)
    z = jnp.dot(w3_ref[...], h2.astype(jnp.bfloat16),
                preferred_element_type=jnp.float32)                    # [1, TM] f32
    z = z + b3_ref[...]
    o_ref[...] = jax.nn.sigmoid(z).astype(o_ref.dtype)                 # lane-dense store


def brfss_nn_forward(x, params, tm=4096):
    """x: [B, 17] float32. params: PyTorch-layout weights [out, in] and biases [out, 1]."""
    B, F = x.shape
    assert F == 17, "BRFSS_NN expects 17 input features"

    # Tile size: multiple of 128 lanes, no larger than needed for small batches.
    tm_eff = min(tm, max(128, _round_up(B, 128)))
    B_pad = _round_up(B, tm_eff)
    n_steps = B_pad // tm_eff

    # Wrapper-side layout plumbing: pad batch, transpose to batch-on-lanes, bf16.
    x_pad = jnp.pad(x, ((0, B_pad - B), (0, 0)))
    xT = x_pad.T.astype(jnp.bfloat16)                                  # [17, B_pad]
    w1 = params["w1"].astype(jnp.bfloat16)                             # [64, 17]
    w2 = params["w2"].astype(jnp.bfloat16)                             # [32, 64]
    w3 = params["w3"].astype(jnp.bfloat16)                             # [1, 32]
    b1 = params["b1"].astype(jnp.float32)                              # [64, 1]
    b2 = params["b2"].astype(jnp.float32)                              # [32, 1]
    b3 = params["b3"].astype(jnp.float32)                              # [1, 1]

    const = lambda shape: pl.BlockSpec(shape, lambda i: (0, 0))        # VMEM-resident

    weight_bytes = (w1.size + w2.size + w3.size) * 2 + (b1.size + b2.size + b3.size) * 4
    cost = pl.CostEstimate(
        flops=2 * (17 * 64 + 64 * 32 + 32 * 1) * B_pad,
        transcendentals=B_pad,                                         # sigmoid exp
        bytes_accessed=17 * B_pad * 2 + 4 * B_pad + weight_bytes,
    )

    out = pl.pallas_call(
        _mlp_kernel,
        out_shape=jax.ShapeDtypeStruct((1, B_pad), jnp.float32),
        grid=(n_steps,),
        in_specs=[
            pl.BlockSpec((17, tm_eff), lambda i: (0, i)),              # x streams per step
            const(w1.shape), const(b1.shape),
            const(w2.shape), const(b2.shape),
            const(w3.shape), const(b3.shape),
        ],
        out_specs=pl.BlockSpec((1, tm_eff), lambda i: (0, i)),
        compiler_params=pltpu.CompilerParams(
            # Batch steps are independent -> shard across TensorCores on v7x.
            dimension_semantics=("parallel",),
        ),
        cost_estimate=cost,
    )(xT, w1, b1, w2, b2, w3, b3)

    return out[:, :B].T                                                # [B, 1] f32


def init_params(key):
    """PyTorch nn.Linear default init (U[-1/sqrt(fan_in), 1/sqrt(fan_in)]).
    Weights stored PyTorch-style [out, in]; biases as [out, 1]. All f32."""
    dims = [(17, 64), (64, 32), (32, 1)]
    params = {}
    for i, (fan_in, fan_out) in enumerate(dims, start=1):
        key, kw, kb = jax.random.split(key, 3)
        bound = 1.0 / (fan_in ** 0.5)
        params[f"w{i}"] = jax.random.uniform(
            kw, (fan_out, fan_in), jnp.float32, minval=-bound, maxval=bound)
        params[f"b{i}"] = jax.random.uniform(
            kb, (fan_out, 1), jnp.float32, minval=-bound, maxval=bound)
    return params


def reference_forward(x, p):
    """Pure f32 JAX reference matching the PyTorch forward."""
    h1 = jax.nn.relu(x @ p["w1"].T + p["b1"].T)
    h2 = jax.nn.relu(h1 @ p["w2"].T + p["b2"].T)
    return jax.nn.sigmoid(h2 @ p["w3"].T + p["b3"].T)


if __name__ == "__main__":
    key = jax.random.PRNGKey(0)
    key, kx = jax.random.split(key)
    params = init_params(key)

    # Small, single-tile case.
    B = 8
    x = jax.random.normal(kx, (B, 17), jnp.float32)
    out = jax.block_until_ready(brfss_nn_forward(x, params))
    ref = reference_forward(x, params)
    assert out.shape == (B, 1)
    # bf16 inputs/weights -> loosened tolerance vs the f32 reference.
    assert jnp.max(jnp.abs(out - ref)) < 2e-2, "mismatch vs JAX reference (B=8)"

    # Multi-step grid with batch padding (B not a multiple of the tile).
    B2 = 300
    x2 = jax.random.normal(jax.random.PRNGKey(1), (B2, 17), jnp.float32)
    out2 = jax.block_until_ready(brfss_nn_forward(x2, params, tm=128))
    ref2 = reference_forward(x2, params)
    assert out2.shape == (B2, 1)
    assert jnp.max(jnp.abs(out2 - ref2)) < 2e-2, "mismatch vs JAX reference (B=300)"

    print("KERNEL_OK")
</pallas_src>

<mosaic_0001>
module attributes {stable_mosaic.version = 11 : i64} {
  func.func @_mlp_kernel(%arg0: i32, %arg1: memref<17x128xbf16, #tpu.memory_space<vmem>>, %arg2: memref<64x17xbf16, #tpu.memory_space<vmem>>, %arg3: memref<64x1xf32, #tpu.memory_space<vmem>>, %arg4: memref<32x64xbf16, #tpu.memory_space<vmem>>, %arg5: memref<32x1xf32, #tpu.memory_space<vmem>>, %arg6: memref<1x32xbf16, #tpu.memory_space<vmem>>, %arg7: memref<1x1xf32, #tpu.memory_space<vmem>>, %arg8: memref<1x128xf32, #tpu.memory_space<vmem>>) attributes {dimension_semantics = [#tpu.dimension_semantics<parallel>], iteration_bounds = array<i64: 1>, scalar_prefetch = 0 : i64, scratch_operands = 0 : i64, tpu.core_type = #tpu.core_type<tc>, window_params = [{transform_indices = @transform_0, window_bounds = array<i64: 17, 128>}, {pipeline_mode = #tpu.pipeline_mode<synchronous>, transform_indices = @transform_1, window_bounds = array<i64: 64, 17>}, {pipeline_mode = #tpu.pipeline_mode<synchronous>, transform_indices = @transform_2, window_bounds = array<i64: 64, 1>}, {pipeline_mode = #tpu.pipeline_mode<synchronous>, transform_indices = @transform_3, window_bounds = array<i64: 32, 64>}, {pipeline_mode = #tpu.pipeline_mode<synchronous>, transform_indices = @transform_4, window_bounds = array<i64: 32, 1>}, {pipeline_mode = #tpu.pipeline_mode<synchronous>, transform_indices = @transform_5, window_bounds = array<i64: 1, 32>}, {pipeline_mode = #tpu.pipeline_mode<synchronous>, transform_indices = @transform_6, window_bounds = array<i64: 1, 1>}, {transform_indices = @transform_7, window_bounds = array<i64: 1, 128>}]} {
    %c0 = arith.constant 0 : index
    %c0_0 = arith.constant 0 : index
    %0 = vector.load %arg1[%c0, %c0_0] : memref<17x128xbf16, #tpu.memory_space<vmem>>, vector<17x128xbf16>
    %c0_1 = arith.constant 0 : index
    %c0_2 = arith.constant 0 : index
    %1 = vector.load %arg2[%c0_1, %c0_2] : memref<64x17xbf16, #tpu.memory_space<vmem>>, vector<64x17xbf16>
    %cst = arith.constant dense<0.000000e+00> : vector<64x128xf32>
    %2 = tpu.matmul %1, %0, %cst {dimension_numbers = #tpu.dot_dimension_numbers<[1], [0], [0], [1], [0, 0, 1, 1], [], []>} : vector<64x17xbf16>, vector<17x128xbf16>, vector<64x128xf32> -> vector<64x128xf32>
    %c0_3 = arith.constant 0 : index
    %c0_4 = arith.constant 0 : index
    %3 = vector.load %arg3[%c0_3, %c0_4] : memref<64x1xf32, #tpu.memory_space<vmem>>, vector<64x1xf32>
    %4 = vector.broadcast %3 : vector<64x1xf32> to vector<64x128xf32>
    %5 = arith.addf %2, %4 : vector<64x128xf32>
    %cst_5 = arith.constant 0.000000e+00 : f32
    %6 = vector.broadcast %cst_5 : f32 to vector<64x128xf32>
    %7 = arith.maximumf %5, %6 : vector<64x128xf32>
    %c0_6 = arith.constant 0 : index
    %c0_7 = arith.constant 0 : index
    %8 = vector.load %arg4[%c0_6, %c0_7] : memref<32x64xbf16, #tpu.memory_space<vmem>>, vector<32x64xbf16>
    %9 = arith.truncf %7 : vector<64x128xf32> to vector<64x128xbf16>
    %cst_8 = arith.constant dense<0.000000e+00> : vector<32x128xf32>
    %10 = tpu.matmul %8, %9, %cst_8 {dimension_numbers = #tpu.dot_dimension_numbers<[1], [0], [0], [1], [0, 0, 1, 1], [], []>} : vector<32x64xbf16>, vector<64x128xbf16>, vector<32x128xf32> -> vector<32x128xf32>
    %c0_9 = arith.constant 0 : index
    %c0_10 = arith.constant 0 : index
    %11 = vector.load %arg5[%c0_9, %c0_10] : memref<32x1xf32, #tpu.memory_space<vmem>>, vector<32x1xf32>
    %12 = vector.broadcast %11 : vector<32x1xf32> to vector<32x128xf32>
    %13 = arith.addf %10, %12 : vector<32x128xf32>
    %cst_11 = arith.constant 0.000000e+00 : f32
    %14 = vector.broadcast %cst_11 : f32 to vector<32x128xf32>
    %15 = arith.maximumf %13, %14 : vector<32x128xf32>
    %c0_12 = arith.constant 0 : index
    %c0_13 = arith.constant 0 : index
    %16 = vector.load %arg6[%c0_12, %c0_13] : memref<1x32xbf16, #tpu.memory_space<vmem>>, vector<1x32xbf16>
    %17 = arith.truncf %15 : vector<32x128xf32> to vector<32x128xbf16>
    %cst_14 = arith.constant dense<0.000000e+00> : vector<1x128xf32>
    %18 = tpu.matmul %16, %17, %cst_14 {dimension_numbers = #tpu.dot_dimension_numbers<[1], [0], [0], [1], [0, 0, 1, 1], [], []>} : vector<1x32xbf16>, vector<32x128xbf16>, vector<1x128xf32> -> vector<1x128xf32>
    %c0_15 = arith.constant 0 : index
    %c0_16 = arith.constant 0 : index
    %19 = vector.load %arg7[%c0_15, %c0_16] : memref<1x1xf32, #tpu.memory_space<vmem>>, vector<1x1xf32>
    %20 = vector.broadcast %19 : vector<1x1xf32> to vector<1x128xf32>
    %21 = arith.addf %18, %20 : vector<1x128xf32>
    %22 = arith.negf %21 : vector<1x128xf32>
    %23 = math.exp %22 : vector<1x128xf32>
    %cst_17 = arith.constant 1.000000e+00 : f32
    %24 = vector.broadcast %cst_17 : f32 to vector<1x128xf32>
    %25 = arith.addf %24, %23 : vector<1x128xf32>
    %26 = arith.divf %24, %25 : vector<1x128xf32>
    %c0_18 = arith.constant 0 : index
    %c0_19 = arith.constant 0 : index
    %27 = vector.load %arg8[%c0_18, %c0_19] : memref<1x128xf32, #tpu.memory_space<vmem>>, vector<1x128xf32>
    tpu.vector_store %arg8[%c0_18, %c0_19], %26 {strides = array<i32>} : memref<1x128xf32, #tpu.memory_space<vmem>>, vector<1x128xf32>,
    return
  }
  func.func @transform_0(%arg0: i32) -> (i32, i32) {
    %c0_i32 = arith.constant 0 : i32
    %c0_i32_0 = arith.constant 0 : i32
    return %c0_i32, %arg0 : i32, i32
  }
  func.func @transform_1(%arg0: i32) -> (i32, i32) {
    %c0_i32 = arith.constant 0 : i32
    %c0_i32_0 = arith.constant 0 : i32
    %c0_i32_1 = arith.constant 0 : i32
    return %c0_i32, %c0_i32_0 : i32, i32
  }
  func.func @transform_2(%arg0: i32) -> (i32, i32) {
    %c0_i32 = arith.constant 0 : i32
    %c0_i32_0 = arith.constant 0 : i32
    %c0_i32_1 = arith.constant 0 : i32
    return %c0_i32, %c0_i32_0 : i32, i32
  }
  func.func @transform_3(%arg0: i32) -> (i32, i32) {
    %c0_i32 = arith.constant 0 : i32
    %c0_i32_0 = arith.constant 0 : i32
    %c0_i32_1 = arith.constant 0 : i32
    return %c0_i32, %c0_i32_0 : i32, i32
  }
  func.func @transform_4(%arg0: i32) -> (i32, i32) {
    %c0_i32 = arith.constant 0 : i32
    %c0_i32_0 = arith.constant 0 : i32
    %c0_i32_1 = arith.constant 0 : i32
    return %c0_i32, %c0_i32_0 : i32, i32
  }
  func.func @transform_5(%arg0: i32) -> (i32, i32) {
    %c0_i32 = arith.constant 0 : i32
    %c0_i32_0 = arith.constant 0 : i32
    %c0_i32_1 = arith.constant 0 : i32
    return %c0_i32, %c0_i32_0 : i32, i32
  }
  func.func @transform_6(%arg0: i32) -> (i32, i32) {
    %c0_i32 = arith.constant 0 : i32
    %c0_i32_0 = arith.constant 0 : i32
    %c0_i32_1 = arith.constant 0 : i32
    return %c0_i32, %c0_i32_0 : i32, i32
  }
  func.func @transform_7(%arg0: i32) -> (i32, i32) {
    %c0_i32 = arith.constant 0 : i32
    %c0_i32_0 = arith.constant 0 : i32
    return %c0_i32, %arg0 : i32, i32
  }
}

</mosaic_0001>

<llo_original>
// kernel: tpu_custom_call.1
$region0: #{tpu_custom_call.1}
  #allocation0 [shape = 'u32[]', space=smem, size = 0x4, offset = 0x4, fixed_abs, tag = 'smem constant byte address 0x4 - core index']
  #allocation1 [shape = 'u32[144,128]{1,0:T(1,128)}', space=vmem, size = 0x12000, scoped, tag = 'internal scratch']
  #allocation2 [shape = 'f32[1,1]{1,0:T(1,128)S(1)}', space=vmem, size = 0x200, scoped, tag = 'scoped memory for tpu_custom_call.1']
  %s0 = inlined_call_operand.vmem [shape: bf16[17,128], index: 0, kind: input, shape index: {}]
  %s1 = inlined_call_operand.vmem [shape: bf16[64,17], index: 1, kind: input, shape index: {}]
  %s2 = inlined_call_operand.vmem [shape: f32[64,1], index: 2, kind: input, shape index: {}]
  %s3 = inlined_call_operand.vmem [shape: bf16[32,64], index: 3, kind: input, shape index: {}]
  %s4 = inlined_call_operand.vmem [shape: f32[32,1], index: 4, kind: input, shape index: {}]
  %s5 = inlined_call_operand.vmem [shape: bf16[1,32], index: 5, kind: input, shape index: {}]
  %s6 = inlined_call_operand.<no memory space> [shape: f32[1,1], index: 6, kind: input, shape index: {}]
  %s7 = inlined_call_operand.hbm [shape: f32[1,128], index: 7, kind: output, shape index: {}]
  %s8 = sld [smem:[#allocation0]]
  $region38: #{tpu_custom_call.1} parent=0
    _
  %s10 = ssub.s32 1, %s8
  %s11 = scalar_select 0, %s10, %s8
  %v12 = vstv %s6
  %13 = vst [vmem:[#allocation2] sm:$0x1] %v12
  $region1: #{tpu_custom_call.1} parent=0
    #allocation3 [shape = 'u8[512]{0}', space=vmem, size = 0x400, scoped, tag = 'output window, operand 0, single buffered']
    #allocation4 [shape = 's32[1]{0}', space=sflag, size = 0x4, scoped, tag = 'scoped memory for tpu_custom_call.1']
    %14 = vsyncpa [#allocation4], 0
    // Predicated region
    $region2: #{tpu_custom_call.1} parent=1 // pred_check
      _
    $region3: #{tpu_custom_call.1} parent=1 // pred_check_branch
      %16 = sbr.rel (0) target = $region5
    $region4: #{tpu_custom_call.1} parent=1 // pred_region
      _
    $region5: #{tpu_custom_call.1} parent=1 // pred_fallthru
      _
    // Predicated region
    $region6: #{tpu_custom_call.1} parent=1 // pred_check
      _
    $region7: #{tpu_custom_call.1} parent=1 // pred_check_branch
      %18 = sbr.rel (0) target = $region9
    $region8: #{tpu_custom_call.1} parent=1 // pred_region
      _
    $region9: #{tpu_custom_call.1} parent=1 // pred_fallthru
      _
    // Predicated region
    $region10: #{tpu_custom_call.1} parent=1 // pred_check
      _
    $region11: #{tpu_custom_call.1} parent=1 // pred_check_branch
      %20 = sbr.rel (0) target = $region13
    $region12: #{tpu_custom_call.1} parent=1 // pred_region
      _
    $region13: #{tpu_custom_call.1} parent=1 // pred_fallthru
      _
    // Predicated region
    $region14: #{tpu_custom_call.1} parent=1 // pred_check
      _
    $region15: #{tpu_custom_call.1} parent=1 // pred_check_branch
      %22 = sbr.rel (0) target = $region17
    $region16: #{tpu_custom_call.1} parent=1 // pred_region
      _
    $region17: #{tpu_custom_call.1} parent=1 // pred_fallthru
      _
    // Predicated region
    $region18: #{tpu_custom_call.1} parent=1 // pred_check
      _
    $region19: #{tpu_custom_call.1} parent=1 // pred_check_branch
      %24 = sbr.rel (0) target = $region21
    $region20: #{tpu_custom_call.1} parent=1 // pred_region
      _
    $region21: #{tpu_custom_call.1} parent=1 // pred_fallthru
      _
    // Predicated region
    $region22: #{tpu_custom_call.1} parent=1 // pred_check
      _
    $region23: #{tpu_custom_call.1} parent=1 // pred_check_branch
      %26 = sbr.rel (0) target = $region25
    $region24: #{tpu_custom_call.1} parent=1 // pred_region
      _
    $region25: #{tpu_custom_call.1} parent=1 // pred_fallthru
      _
    // Predicated region
    $region26: #{tpu_custom_call.1} parent=1 // pred_check
      _
    $region27: #{tpu_custom_call.1} parent=1 // pred_check_branch
      %28 = sbr.rel (0) target = $region29
    $region28: #{tpu_custom_call.1} parent=1 // pred_region
      _
    $region29: #{tpu_custom_call.1} parent=1 // pred_fallthru
      _
    %v30 = vld [vmem:[%s0] sm:$0xf]
    %v31 = vld [vmem:[%s0 + $0x4] sm:$0xf]
    %v32 = vld [vmem:[%s0 + $0x8] sm:$0x1]
    %v33 = vld [vmem:[%s1] sm:$0xf]
    %v34 = vld [vmem:[%s1 + $0x4] sm:$0xf]
    %v35 = vld [vmem:[%s1 + $0x8] sm:$0xf]
    %v36 = vld [vmem:[%s1 + $0xc] sm:$0xf]
    %v37 = vld [vmem:[%s1 + $0x10] sm:$0xf]
    %v38 = vld [vmem:[%s1 + $0x14] sm:$0xf]
    %v39 = vld [vmem:[%s1 + $0x18] sm:$0xf]
    %v40 = vld [vmem:[%s1 + $0x1c] sm:$0xf]
    %v41 = vld [vmem:[%s2] sm:$0xff]
    %v42 = vld [vmem:[%s2 + $0x8] sm:$0xff]
    %v43 = vld [vmem:[%s2 + $0x10] sm:$0xff]
    %v44 = vld [vmem:[%s2 + $0x18] sm:$0xff]
    %v45 = vld [vmem:[%s2 + $0x20] sm:$0xff]
    %v46 = vld [vmem:[%s2 + $0x28] sm:$0xff]
    %v47 = vld [vmem:[%s2 + $0x30] sm:$0xff]
    %v48 = vld [vmem:[%s2 + $0x38] sm:$0xff]
    %50 = vset.pattern.permute.xlu0 0
    %51 = vperm.xlu0 %50, %v41
    %v52 = vpop.permute.xlu0 %51
    %55 = vset.pattern.permute.xlu0 0
    %56 = vperm.xlu0 %55, %v42
    %v57 = vpop.permute.xlu0 %56
    %60 = vset.pattern.permute.xlu0 0
    %61 = vperm.xlu0 %60, %v43
    %v62 = vpop.permute.xlu0 %61
    %65 = vset.pattern.permute.xlu0 0
    %66 = vperm.xlu0 %65, %v44
    %v67 = vpop.permute.xlu0 %66
    %70 = vset.pattern.permute.xlu0 0
    %71 = vperm.xlu0 %70, %v45
    %v72 = vpop.permute.xlu0 %71
    %75 = vset.pattern.permute.xlu0 0
    %76 = vperm.xlu0 %75, %v46
    %v77 = vpop.permute.xlu0 %76
    %80 = vset.pattern.permute.xlu0 0
    %81 = vperm.xlu0 %80, %v47
    %v82 = vpop.permute.xlu0 %81
    %85 = vset.pattern.permute.xlu0 0
    %86 = vperm.xlu0 %85, %v48
    %v87 = vpop.permute.xlu0 %86
    %v97 = vunpack.c.l.b16 %v33
    %v98 = vunpack.c.l.b16 %v34
    %v99 = vunpack.c.l.b16 %v35
    %v100 = vunpack.c.l.b16 %v36
    %v101 = vunpack.c.l.b16 %v37
    %v102 = vunpack.c.l.b16 %v38
    %v103 = vunpack.c.l.b16 %v39
    %v104 = vunpack.c.l.b16 %v40
    %v105 = vpack.c.b16 %v98, %v97
    %v106 = vpack.c.b16 %v100, %v99
    %v107 = vpack.c.b16 %v102, %v101
    %v108 = vpack.c.b16 %v104, %v103
    %v112 = vunpack.c.l.b16 %v30
    %v113 = vunpack.c.l.b16 %v31
    %v114 = vunpack.c.l.b16 %v32
    %v115 = vpack.c.b16 %v113, %v112
    %v116 = vpack.c.b16 %v114, %v114
    %vm118 = vcmask 138240
    %v120 = vsel %vm118, %v105, 0
    %v123 = vsel %vm118, %v106, 0
    %v126 = vsel %vm118, %v107, 0
    %v129 = vsel %vm118, %v108, 0
    %vm131 = vcmask 1040384
    %v132 = vsel 0, 4294967295, 65535
    %v133 = vsel %vm131, %v132, 0
    %v135 = vand.u32 %v116, %v133
    %137 = vmatprep.subr.bf16.mxu0 0
    %138 = vmatpush1.bf16.msra.mxu0 0
    %139 = vmatprep.subr.bf16.mxu0 0
    %140 = vmatpush1.bf16.msra.mxu0 0
    %141 = vmatprep.subr.bf16.mxu0 0
    %142 = vmatpush1.bf16.msra.mxu0 0
    %143 = vmatprep.subr.bf16.mxu0 0
    %144 = vmatpush1.bf16.msra.mxu0 0
    %145 = vmatprep.subr.bf16.mxu0 0
    %146 = vmatpush1.bf16.msra.mxu0 0
    %147 = vmatprep.subr.bf16.mxu0 0
    %148 = vmatpush1.bf16.msra.mxu0 0
    %149 = vmatprep.subr.bf16.mxu0 0
    %150 = vmatpush1.bf16.msra.mxu0 %v135
    %151 = vmatprep.subr.bf16.mxu0 0
    %152 = vmatpush1.bf16.msra.mxu0 %v115
    %153 = vmatprep.subr.bf16.mxu0 0
    %154 = vmatpush2.bf16.msra.mxu0 0
    %155 = vmatprep.subr.bf16.mxu0 0
    %156 = vmatpush2.bf16.msra.mxu0 0
    %157 = vmatprep.subr.bf16.mxu0 0
    %158 = vmatpush2.bf16.msra.mxu0 0
    %159 = vmatprep.subr.bf16.mxu0 0
    %160 = vmatpush2.bf16.msra.mxu0 0
    %161 = vmatprep.subr.bf16.mxu0 0
    %162 = vmatpush2.bf16.msra.mxu0 0
    %163 = vmatprep.subr.bf16.mxu0 0
    %164 = vmatpush2.bf16.msra.mxu0 0
    %165 = vmatprep.subr.bf16.mxu0 0
    %166 = vmatpush2.bf16.msra.mxu0 0
    %167 = vmatprep.subr.bf16.mxu0 0
    %168 = vmatpush2.bf16.msra.mxu0 0
    %169 = vmatprep.mubr.bf16.mxu0 0
    %170 = vmatmul.mubr.bf16.gmra.mxu0 %v120
    %v171 = vpop.f32.mrf.mxu0
    %v172 = vadd.f32 %v52, %v171
    %v173 = vpop.f32.mrf.mxu0
    %v174 = vpop.f32.mrf.mxu0
    %v175 = vadd.f32 %v57, %v174
    %v176 = vpop.f32.mrf.mxu0
    %177 = vmatprep.mubr.bf16.mxu0 0
    %178 = vmatmul.mubr.bf16.gmra.mxu0 %v123
    %v179 = vpop.f32.mrf.mxu0
    %v180 = vadd.f32 %v62, %v179
    %v181 = vpop.f32.mrf.mxu0
    %v182 = vpop.f32.mrf.mxu0
    %v183 = vadd.f32 %v67, %v182
    %v184 = vpop.f32.mrf.mxu0
    %185 = vmatprep.mubr.bf16.mxu0 0
    %186 = vmatmul.mubr.bf16.gmra.mxu0 %v126
    %v187 = vpop.f32.mrf.mxu0
    %v188 = vadd.f32 %v72, %v187
    %v189 = vpop.f32.mrf.mxu0
    %v190 = vpop.f32.mrf.mxu0
    %v191 = vadd.f32 %v77, %v190
    %v192 = vpop.f32.mrf.mxu0
    %193 = vmatprep.mubr.bf16.mxu0 0
    %194 = vmatmul.mubr.bf16.gmra.mxu0 %v129
    %v195 = vpop.f32.mrf.mxu0
    %v196 = vadd.f32 %v82, %v195
    %v197 = vpop.f32.mrf.mxu0
    %v198 = vpop.f32.mrf.mxu0
    %v199 = vadd.f32 %v87, %v198
    %v200 = vpop.f32.mrf.mxu0
    %201 = vdwg.mxu0
    %v202 = vmax.f32 %v172, 0.0
    %v203 = vmax.f32 %v175, 0.0
    %v204 = vmax.f32 %v180, 0.0
    %v205 = vmax.f32 %v183, 0.0
    %v206 = vmax.f32 %v188, 0.0
    %v207 = vmax.f32 %v191, 0.0
    %v208 = vmax.f32 %v196, 0.0
    %v209 = vmax.f32 %v199, 0.0
    %v210 = vld [vmem:[%s3] sm:$0xf]
    %v211 = vld [vmem:[%s3 + $0x4] sm:$0xf]
    %v212 = vld [vmem:[%s3 + $0x8] sm:$0xf]
    %v213 = vld [vmem:[%s3 + $0xc] sm:$0xf]
    %v214 = vpack.c.bf16 %v203, %v202
    %v215 = vpack.c.bf16 %v205, %v204
    %v216 = vpack.c.bf16 %v207, %v206
    %v217 = vpack.c.bf16 %v209, %v208
    %v218 = vld [vmem:[%s4] sm:$0xff]
    %v219 = vld [vmem:[%s4 + $0x8] sm:$0xff]
    %v220 = vld [vmem:[%s4 + $0x10] sm:$0xff]
    %v221 = vld [vmem:[%s4 + $0x18] sm:$0xff]
    %223 = vset.pattern.permute.xlu0 0
    %224 = vperm.xlu0 %223, %v218
    %v225 = vpop.permute.xlu0 %224
    %228 = vset.pattern.permute.xlu0 0
    %229 = vperm.xlu0 %228, %v219
    %v230 = vpop.permute.xlu0 %229
    %233 = vset.pattern.permute.xlu0 0
    %234 = vperm.xlu0 %233, %v220
    %v235 = vpop.permute.xlu0 %234
    %238 = vset.pattern.permute.xlu0 0
    %239 = vperm.xlu0 %238, %v221
    %v240 = vpop.permute.xlu0 %239
    %v246 = vunpack.c.l.b16 %v210
    %v247 = vunpack.c.l.b16 %v211
    %v248 = vunpack.c.l.b16 %v212
    %v249 = vunpack.c.l.b16 %v213
    %v250 = vpack.c.b16 %v247, %v246
    %v251 = vpack.c.b16 %v249, %v248
    %vm252 = vcmask 523264
    %v254 = vsel %vm252, %v250, 0
    %v257 = vsel %vm252, %v251, 0
    %259 = vmatprep.subr.bf16.mxu0 0
    %260 = vmatpush1.bf16.msra.mxu0 0
    %261 = vmatprep.subr.bf16.mxu0 0
    %262 = vmatpush1.bf16.msra.mxu0 0
    %263 = vmatprep.subr.bf16.mxu0 0
    %264 = vmatpush1.bf16.msra.mxu0 0
    %265 = vmatprep.subr.bf16.mxu0 0
    %266 = vmatpush1.bf16.msra.mxu0 0
    %267 = vmatprep.subr.bf16.mxu0 0
    %268 = vmatpush1.bf16.msra.mxu0 %v217
    %269 = vmatprep.subr.bf16.mxu0 0
    %270 = vmatpush1.bf16.msra.mxu0 %v216
    %271 = vmatprep.subr.bf16.mxu0 0
    %272 = vmatpush1.bf16.msra.mxu0 %v215
    %273 = vmatprep.subr.bf16.mxu0 0
    %274 = vmatpush1.bf16.msra.mxu0 %v214
    %275 = vmatprep.subr.bf16.mxu0 0
    %276 = vmatpush2.bf16.msra.mxu0 0
    %277 = vmatprep.subr.bf16.mxu0 0
    %278 = vmatpush2.bf16.msra.mxu0 0
    %279 = vmatprep.subr.bf16.mxu0 0
    %280 = vmatpush2.bf16.msra.mxu0 0
    %281 = vmatprep.subr.bf16.mxu0 0
    %282 = vmatpush2.bf16.msra.mxu0 0
    %283 = vmatprep.subr.bf16.mxu0 0
    %284 = vmatpush2.bf16.msra.mxu0 0
    %285 = vmatprep.subr.bf16.mxu0 0
    %286 = vmatpush2.bf16.msra.mxu0 0
    %287 = vmatprep.subr.bf16.mxu0 0
    %288 = vmatpush2.bf16.msra.mxu0 0
    %289 = vmatprep.subr.bf16.mxu0 0
    %290 = vmatpush2.bf16.msra.mxu0 0
    %291 = vmatprep.mubr.bf16.mxu0 0
    %292 = vmatmul.mubr.bf16.gmra.mxu0 %v254
    %v293 = vpop.f32.mrf.mxu0
    %v294 = vadd.f32 %v225, %v293
    %v295 = vpop.f32.mrf.mxu0
    %v296 = vpop.f32.mrf.mxu0
    %v297 = vadd.f32 %v230, %v296
    %v298 = vpop.f32.mrf.mxu0
    %299 = vmatprep.mubr.bf16.mxu0 0
    %300 = vmatmul.mubr.bf16.gmra.mxu0 %v257
    %v301 = vpop.f32.mrf.mxu0
    %v302 = vadd.f32 %v235, %v301
    %v303 = vpop.f32.mrf.mxu0
    %v304 = vpop.f32.mrf.mxu0
    %v305 = vadd.f32 %v240, %v304
    %v306 = vpop.f32.mrf.mxu0
    %307 = vdwg.mxu0
    %v308 = vmax.f32 %v294, 0.0
    %v309 = vmax.f32 %v297, 0.0
    %v310 = vmax.f32 %v302, 0.0
    %v311 = vmax.f32 %v305, 0.0
    %v312 = vld [vmem:[%s5] sm:$0x1]
    %v313 = vpack.c.bf16 %v309, %v308
    %v314 = vpack.c.bf16 %v311, %v310
    %v315 = vld [vmem:[#allocation2] sm:$0x1]
    %317 = vset.pattern.permute.xlu0 0
    %318 = vperm.xlu0 %317, %v315
    %v319 = vpop.permute.xlu0 %318
    %v321 = vlaneseq
    %v322 = vshrl.u32 %v321, 7
    %v323 = vsub.s32 0, %v322
    %v324 = vrot.slane %v319, %v323
    %vm325 = vcmask 261120
    %v327 = vsel %vm325, %v312, 0
    %329 = vmatprep.subr.bf16.mxu0 0
    %330 = vmatpush1.bf16.msra.mxu0 0
    %331 = vmatprep.subr.bf16.mxu0 0
    %332 = vmatpush1.bf16.msra.mxu0 0
    %333 = vmatprep.subr.bf16.mxu0 0
    %334 = vmatpush1.bf16.msra.mxu0 0
    %335 = vmatprep.subr.bf16.mxu0 0
    %336 = vmatpush1.bf16.msra.mxu0 0
    %337 = vmatprep.subr.bf16.mxu0 0
    %338 = vmatpush1.bf16.msra.mxu0 0
    %339 = vmatprep.subr.bf16.mxu0 0
    %340 = vmatpush1.bf16.msra.mxu0 0
    %341 = vmatprep.subr.bf16.mxu0 0
    %342 = vmatpush1.bf16.msra.mxu0 %v314
    %343 = vmatprep.subr.bf16.mxu0 0
    %344 = vmatpush1.bf16.msra.mxu0 %v313
    %345 = vmatprep.subr.bf16.mxu0 0
    %346 = vmatpush2.bf16.msra.mxu0 0
    %347 = vmatprep.subr.bf16.mxu0 0
    %348 = vmatpush2.bf16.msra.mxu0 0
    %349 = vmatprep.subr.bf16.mxu0 0
    %350 = vmatpush2.bf16.msra.mxu0 0
    %351 = vmatprep.subr.bf16.mxu0 0
    %352 = vmatpush2.bf16.msra.mxu0 0
    %353 = vmatprep.subr.bf16.mxu0 0
    %354 = vmatpush2.bf16.msra.mxu0 0
    %355 = vmatprep.subr.bf16.mxu0 0
    %356 = vmatpush2.bf16.msra.mxu0 0
    %357 = vmatprep.subr.bf16.mxu0 0
    %358 = vmatpush2.bf16.msra.mxu0 0
    %359 = vmatprep.subr.bf16.mxu0 0
    %360 = vmatpush2.bf16.msra.mxu0 0
    %361 = vmatprep.mubr.bf16.mxu0 0
    %362 = vmatmul.mubr.bf16.gmra.mxu0 %v327
    %v363 = vpop.f32.mrf.mxu0
    %v364 = vadd.f32 %v324, %v363
    %v365 = vpop.f32.mrf.mxu0
    %v366 = vpop.f32.mrf.mxu0
    %v367 = vpop.f32.mrf.mxu0
    %368 = vdwg.mxu0
    %v369 = vxor.u32 %v364, 2147483648
    %v370 = vmul.f32 %v369, 1.442695
    %v371 = vpow.pop %v370
    %v372 = vadd.f32 %v371, 1.0
    %v373 = vrcp.pop %v372
    %v374 = vmul.f32 1.0, %v373
    %375 = vst [vmem:[#allocation3] sm:$0x1] %v374
    // Predicated region
    $region30: #{tpu_custom_call.1} parent=1 // pred_check
      _
    $region31: #{tpu_custom_call.1} parent=1 // pred_check_branch
      %377 = sbr.rel (0) target = $region33
    $region32: #{tpu_custom_call.1} parent=1 // pred_region
      %s379 = ssub.s32 16, 16
      %380 = vsyncadd [#allocation4], %s379
      %s382 = sshll.u32 [#allocation3], 4
      %s383 = int_to_ptr.vmem [resolvable:$true] %s382
      %385 = dma.vmem_to_hbm [thread:$0]  %s383, 16, %s7, [#allocation4]
    $region33: #{tpu_custom_call.1} parent=1 // pred_fallthru
      _
    // Predicated region
    $region34: #{tpu_custom_call.1} parent=1 // pred_check
      _
    $region35: #{tpu_custom_call.1} parent=1 // pred_check_branch
      %387 = sbr.rel (0) target = $region37
    $region36: #{tpu_custom_call.1} parent=1 // pred_region
      %388 = dma.done [#allocation4], 16
    $region37: #{tpu_custom_call.1} parent=1 // pred_fallthru
      _
    %389 = vsyncpa [#allocation4], 1

</llo_original>
